<compile_context>
chip_gen: v7x
topology: tpu7x:2x2x1
jax: 0.10.0
libtpu: 0.0.40
codegen_flags: <defaults>
</compile_context>

<pallas_src>
import jax
import jax.numpy as jnp
from jax import lax
from jax.experimental import pallas as pl
from jax.experimental.pallas import tpu as pltpu


def _round_up(n, m):
    return ((n + m - 1) // m) * m


def _choose_ff_tile(d_ff, ff_block):
    """Largest 128-multiple divisor of d_ff that is <= ff_block (or d_ff)."""
    if d_ff <= ff_block:
        return d_ff
    t = (ff_block // 128) * 128
    while t >= 128:
        if d_ff % t == 0:
            return t
        t -= 128
    return d_ff  # no clean tile; keep full d_ff


# ----------------------------------------------------------------------------
# Fast path: weights resident in VMEM, 1-D grid over token blocks.
# ----------------------------------------------------------------------------
def _ffn_resident_kernel(x_ref, w1_ref, b1_ref, w2_ref, b2_ref, out_ref):
    # x_ref : (tm, d_model),  w1_ref: (d_model, d_ff),  b1_ref: (1, d_ff) f32
    # w2_ref: (d_ff, d_model), b2_ref: (1, d_model) f32, out_ref: (tm, d_model)
    h = jnp.dot(x_ref[...], w1_ref[...], preferred_element_type=jnp.float32)
    h = jnp.maximum(h + b1_ref[...], 0.0)
    # TODO(synk): dropout is identity (eval mode); training-mode dropout would
    # need pltpu.prng_seed + pltpu.stateful_bernoulli applied to h here.
    y = jnp.dot(h.astype(w2_ref.dtype), w2_ref[...],
                preferred_element_type=jnp.float32)
    out_ref[...] = (y + b2_ref[...]).astype(out_ref.dtype)


# ----------------------------------------------------------------------------
# Fallback path: d_ff tiled as a reduction axis (last grid axis, "arbitrary").
# ----------------------------------------------------------------------------
def _ffn_tiled_body(x_ref, w1_ref, b1_ref, w2_ref, b2_ref, out_ref, acc_ref,
                    finalize):
    j = pl.program_id(1)

    @pl.when(j == 0)
    def _():
        # Fold the b2 add into the accumulator init (removes it from the
        # finalize epilogue on the critical path).
        acc_ref[...] = jnp.broadcast_to(
            b2_ref[...].astype(acc_ref.dtype), acc_ref.shape)

    # First linear (this d_ff chunk) + bias + ReLU, f32 accumulation on MXU.
    h = jnp.dot(x_ref[...], w1_ref[...], preferred_element_type=jnp.float32)
    h = jnp.maximum(h + b1_ref[...], 0.0)

    # Second linear: accumulate the partial product for this d_ff chunk.
    acc_ref[...] += jnp.dot(h.astype(w2_ref.dtype), w2_ref[...],
                            preferred_element_type=jnp.float32)

    if finalize:
        @pl.when(j == pl.num_programs(1) - 1)
        def _():
            out_ref[...] = acc_ref[...].astype(out_ref.dtype)


def _ffn_tiled_kernel_scratch(x_ref, w1_ref, b1_ref, w2_ref, b2_ref, out_ref,
                              acc_ref):
    _ffn_tiled_body(x_ref, w1_ref, b1_ref, w2_ref, b2_ref, out_ref, acc_ref,
                    finalize=True)


def _ffn_tiled_kernel_inplace(x_ref, w1_ref, b1_ref, w2_ref, b2_ref, out_ref):
    # f32 output: accumulate directly into the resident out block.
    _ffn_tiled_body(x_ref, w1_ref, b1_ref, w2_ref, b2_ref, out_ref, out_ref,
                    finalize=False)


# ----------------------------------------------------------------------------
# Wrapper
# ----------------------------------------------------------------------------
def pointwise_feed_forward(x, w1, b1, w2, b2, *,
                           token_block=512, ff_block=2048,
                           compute_dtype=jnp.bfloat16,
                           weight_resident=None,
                           vmem_budget_bytes=24 << 20):
    """relu(x @ w1 + b1) @ w2 + b2, applied pointwise over leading axes.

    x : (..., d_model)
    w1: (d_model, d_ff),  b1: (d_ff,)
    w2: (d_ff, d_model),  b2: (d_model,)
    """
    orig_shape = x.shape
    d_model, d_ff = w1.shape
    assert w2.shape == (d_ff, d_model)
    assert b1.shape == (d_ff,) and b2.shape == (d_model,)

    out_dtype = x.dtype
    cd = jnp.dtype(compute_dtype) if compute_dtype is not None else jnp.dtype(x.dtype)
    cb = cd.itemsize
    ob = jnp.dtype(out_dtype).itemsize

    n = 1
    for s in orig_shape[:-1]:
        n *= s

    # MXU operands in compute dtype (bf16 by default), f32 accumulation.
    x2 = x.reshape(n, d_model).astype(cd)
    w1c = w1.astype(cd)
    w2c = w2.astype(cd)
    b1_2d = b1.reshape(1, d_ff).astype(jnp.float32)
    b2_2d = b2.reshape(1, d_model).astype(jnp.float32)

    # Token (row) tiling: dtype-native sublane multiple; last block may be
    # partial (out-of-range output rows are clipped by Pallas, rows are
    # independent so no wrapper-side pad/slice is needed).
    sub = {4: 8, 2: 16, 1: 32}.get(cb, 8)
    tm = min(token_block, _round_up(n, sub))
    tm = max(sub, (tm // sub) * sub)
    grid_m = pl.cdiv(n, tm)

    # VMEM footprint estimates (double-buffered blocks + intermediates).
    def est_resident(tm_):
        return (2 * tm_ * d_model * cb            # x blocks
                + 2 * tm_ * d_model * ob          # out blocks
                + 2 * 2 * d_model * d_ff * cb     # W1 + W2 (conservative 2x)
                + 8 * (d_ff + d_model)            # biases (f32)
                + tm_ * d_ff * (4 + cb)           # hidden f32 + bf16 cast
                + tm_ * d_model * 4)              # f32 pre-cast output temp

    def est_tiled(tm_, tf_, acc_in_out_):
        acc = 0 if acc_in_out_ else tm_ * d_model * 4
        return (2 * tm_ * d_model * cb + 2 * tm_ * d_model * ob + acc
                + 2 * 2 * d_model * tf_ * cb      # W1 chunk + W2 chunk, 2-buf
                + 8 * (tf_ + d_model)
                + tm_ * tf_ * (4 + cb)
                + tm_ * d_model * 4)

    if weight_resident is None:
        use_resident = est_resident(tm) <= vmem_budget_bytes
    else:
        use_resident = weight_resident

    if use_resident:
        est = est_resident(tm)
        grid_spec = pltpu.PrefetchScalarGridSpec(
            num_scalar_prefetch=0,
            grid=(grid_m,),
            in_specs=[
                pl.BlockSpec((tm, d_model), lambda i: (i, 0)),    # x block
                pl.BlockSpec((d_model, d_ff), lambda i: (0, 0)),  # W1 (resident)
                pl.BlockSpec((1, d_ff), lambda i: (0, 0)),        # b1 (resident)
                pl.BlockSpec((d_ff, d_model), lambda i: (0, 0)),  # W2 (resident)
                pl.BlockSpec((1, d_model), lambda i: (0, 0)),     # b2 (resident)
            ],
            out_specs=pl.BlockSpec((tm, d_model), lambda i: (i, 0)),
            scratch_shapes=[],
        )
        kernel = _ffn_resident_kernel
        dim_sem = ("parallel",)
    else:
        tf = _choose_ff_tile(d_ff, ff_block)
        acc_in_out = jnp.dtype(out_dtype) == jnp.float32
        est = est_tiled(tm, tf, acc_in_out)
        kernel = (_ffn_tiled_kernel_inplace if acc_in_out
                  else _ffn_tiled_kernel_scratch)
        scratch = ([] if acc_in_out
                   else [pltpu.VMEM((tm, d_model), jnp.float32)])
        grid_spec = pltpu.PrefetchScalarGridSpec(
            num_scalar_prefetch=0,
            grid=(grid_m, d_ff // tf),
            in_specs=[
                pl.BlockSpec((tm, d_model), lambda i, j: (i, 0)),   # x block
                pl.BlockSpec((d_model, tf), lambda i, j: (0, j)),   # W1 chunk
                pl.BlockSpec((1, tf),       lambda i, j: (0, j)),   # b1 chunk
                pl.BlockSpec((tf, d_model), lambda i, j: (j, 0)),   # W2 chunk
                pl.BlockSpec((1, d_model),  lambda i, j: (0, 0)),   # b2
            ],
            out_specs=pl.BlockSpec((tm, d_model), lambda i, j: (i, 0)),
            scratch_shapes=scratch,
        )
        dim_sem = ("parallel", "arbitrary")

    vmem_limit = int(min(max(est * 3 // 2 + (2 << 20), 32 << 20), 64 << 20))

    out = pl.pallas_call(
        kernel,
        out_shape=jax.ShapeDtypeStruct((n, d_model), out_dtype),
        grid_spec=grid_spec,
        compiler_params=pltpu.CompilerParams(
            dimension_semantics=dim_sem,
            vmem_limit_bytes=vmem_limit),
    )(x2, w1c, b1_2d, w2c, b2_2d)

    return out.reshape(orig_shape)


if __name__ == "__main__":
    key = jax.random.PRNGKey(0)
    k_x, k_w1, k_b1, k_w2, k_b2 = jax.random.split(key, 5)

    # Small shapes consistent with the module: (batch, seq, d_model), d_ff.
    B, S, d_model, d_ff = 2, 8, 32, 256

    x = jax.random.normal(k_x, (B, S, d_model), dtype=jnp.float32)
    w1 = jax.random.normal(k_w1, (d_model, d_ff), dtype=jnp.float32) * 0.1
    b1 = jax.random.normal(k_b1, (d_ff,), dtype=jnp.float32) * 0.1
    w2 = jax.random.normal(k_w2, (d_ff, d_model), dtype=jnp.float32) * 0.1
    b2 = jax.random.normal(k_b2, (d_model,), dtype=jnp.float32) * 0.1

    # Reference: w2(relu(w1(x))) with dropout in eval mode (identity).
    h_ref = jnp.maximum(
        jnp.dot(x, w1, precision=lax.Precision.HIGHEST) + b1, 0.0)
    ref = jnp.dot(h_ref, w2, precision=lax.Precision.HIGHEST) + b2

    # 1) Weight-resident fast path (default selection for these shapes).
    out_fast = jax.block_until_ready(pointwise_feed_forward(x, w1, b1, w2, b2))
    assert out_fast.shape == (B, S, d_model)
    assert out_fast.dtype == x.dtype
    err_fast = float(jnp.max(jnp.abs(out_fast - ref)))
    assert jnp.allclose(out_fast, ref, atol=5e-2, rtol=5e-2), err_fast

    # 2) Tiled d_ff-reduction fallback (forced; exercises the accumulate-in-
    #    out_ref f32 path with 2 reduction steps).
    out_tiled = jax.block_until_ready(pointwise_feed_forward(
        x, w1, b1, w2, b2, weight_resident=False, ff_block=128))
    err_tiled = float(jnp.max(jnp.abs(out_tiled - ref)))
    assert jnp.allclose(out_tiled, ref, atol=5e-2, rtol=5e-2), err_tiled

    # 3) Tiled fallback with bf16 output (exercises the f32 scratch branch).
    out_bf16 = jax.block_until_ready(pointwise_feed_forward(
        x.astype(jnp.bfloat16), w1, b1, w2, b2,
        weight_resident=False, ff_block=128))
    assert out_bf16.dtype == jnp.bfloat16
    assert jnp.allclose(out_bf16.astype(jnp.float32), ref, atol=1e-1, rtol=1e-1)

    print("KERNEL_OK")
</pallas_src>

<mosaic_0001>
module attributes {stable_mosaic.version = 11 : i64} {
  func.func @_ffn_resident_kernel(%arg0: i32, %arg1: memref<16x32xbf16, #tpu.memory_space<vmem>>, %arg2: memref<32x256xbf16, #tpu.memory_space<vmem>>, %arg3: memref<1x256xf32, #tpu.memory_space<vmem>>, %arg4: memref<256x32xbf16, #tpu.memory_space<vmem>>, %arg5: memref<1x32xf32, #tpu.memory_space<vmem>>, %arg6: memref<16x32xf32, #tpu.memory_space<vmem>>) attributes {dimension_semantics = [#tpu.dimension_semantics<parallel>], iteration_bounds = array<i64: 1>, scalar_prefetch = 0 : i64, scratch_operands = 0 : i64, tpu.core_type = #tpu.core_type<tc>, window_params = [{transform_indices = @transform_0, window_bounds = array<i64: 16, 32>}, {pipeline_mode = #tpu.pipeline_mode<synchronous>, transform_indices = @transform_1, window_bounds = array<i64: 32, 256>}, {pipeline_mode = #tpu.pipeline_mode<synchronous>, transform_indices = @transform_2, window_bounds = array<i64: 1, 256>}, {pipeline_mode = #tpu.pipeline_mode<synchronous>, transform_indices = @transform_3, window_bounds = array<i64: 256, 32>}, {pipeline_mode = #tpu.pipeline_mode<synchronous>, transform_indices = @transform_4, window_bounds = array<i64: 1, 32>}, {transform_indices = @transform_5, window_bounds = array<i64: 16, 32>}]} {
    %c0 = arith.constant 0 : index
    %c0_0 = arith.constant 0 : index
    %0 = vector.load %arg1[%c0, %c0_0] : memref<16x32xbf16, #tpu.memory_space<vmem>>, vector<16x32xbf16>
    %c0_1 = arith.constant 0 : index
    %c0_2 = arith.constant 0 : index
    %1 = vector.load %arg2[%c0_1, %c0_2] : memref<32x256xbf16, #tpu.memory_space<vmem>>, vector<32x256xbf16>
    %cst = arith.constant dense<0.000000e+00> : vector<16x256xf32>
    %2 = tpu.matmul %0, %1, %cst {dimension_numbers = #tpu.dot_dimension_numbers<[1], [0], [0], [1], [0, 0, 1, 1], [], []>} : vector<16x32xbf16>, vector<32x256xbf16>, vector<16x256xf32> -> vector<16x256xf32>
    %c0_3 = arith.constant 0 : index
    %c0_4 = arith.constant 0 : index
    %3 = vector.load %arg3[%c0_3, %c0_4] : memref<1x256xf32, #tpu.memory_space<vmem>>, vector<1x256xf32>
    %4 = vector.broadcast %3 : vector<1x256xf32> to vector<16x256xf32>
    %5 = arith.addf %2, %4 : vector<16x256xf32>
    %cst_5 = arith.constant 0.000000e+00 : f32
    %6 = vector.broadcast %cst_5 : f32 to vector<16x256xf32>
    %7 = arith.maximumf %5, %6 : vector<16x256xf32>
    %8 = arith.truncf %7 : vector<16x256xf32> to vector<16x256xbf16>
    %c0_6 = arith.constant 0 : index
    %c0_7 = arith.constant 0 : index
    %9 = vector.load %arg4[%c0_6, %c0_7] : memref<256x32xbf16, #tpu.memory_space<vmem>>, vector<256x32xbf16>
    %cst_8 = arith.constant dense<0.000000e+00> : vector<16x32xf32>
    %10 = tpu.matmul %8, %9, %cst_8 {dimension_numbers = #tpu.dot_dimension_numbers<[1], [0], [0], [1], [0, 0, 1, 1], [], []>} : vector<16x256xbf16>, vector<256x32xbf16>, vector<16x32xf32> -> vector<16x32xf32>
    %c0_9 = arith.constant 0 : index
    %c0_10 = arith.constant 0 : index
    %11 = vector.load %arg5[%c0_9, %c0_10] : memref<1x32xf32, #tpu.memory_space<vmem>>, vector<1x32xf32>
    %12 = vector.broadcast %11 : vector<1x32xf32> to vector<16x32xf32>
    %13 = arith.addf %10, %12 : vector<16x32xf32>
    %c0_11 = arith.constant 0 : index
    %c0_12 = arith.constant 0 : index
    %14 = vector.load %arg6[%c0_11, %c0_12] : memref<16x32xf32, #tpu.memory_space<vmem>>, vector<16x32xf32>
    tpu.vector_store %arg6[%c0_11, %c0_12], %13 {strides = array<i32>} : memref<16x32xf32, #tpu.memory_space<vmem>>, vector<16x32xf32>,
    return
  }
  func.func @transform_0(%arg0: i32) -> (i32, i32) {
    %c0_i32 = arith.constant 0 : i32
    %c0_i32_0 = arith.constant 0 : i32
    return %arg0, %c0_i32 : i32, i32
  }
  func.func @transform_1(%arg0: i32) -> (i32, i32) {
    %c0_i32 = arith.constant 0 : i32
    %c0_i32_0 = arith.constant 0 : i32
    %c0_i32_1 = arith.constant 0 : i32
    return %c0_i32, %c0_i32_0 : i32, i32
  }
  func.func @transform_2(%arg0: i32) -> (i32, i32) {
    %c0_i32 = arith.constant 0 : i32
    %c0_i32_0 = arith.constant 0 : i32
    %c0_i32_1 = arith.constant 0 : i32
    return %c0_i32, %c0_i32_0 : i32, i32
  }
  func.func @transform_3(%arg0: i32) -> (i32, i32) {
    %c0_i32 = arith.constant 0 : i32
    %c0_i32_0 = arith.constant 0 : i32
    %c0_i32_1 = arith.constant 0 : i32
    return %c0_i32, %c0_i32_0 : i32, i32
  }
  func.func @transform_4(%arg0: i32) -> (i32, i32) {
    %c0_i32 = arith.constant 0 : i32
    %c0_i32_0 = arith.constant 0 : i32
    %c0_i32_1 = arith.constant 0 : i32
    return %c0_i32, %c0_i32_0 : i32, i32
  }
  func.func @transform_5(%arg0: i32) -> (i32, i32) {
    %c0_i32 = arith.constant 0 : i32
    %c0_i32_0 = arith.constant 0 : i32
    return %arg0, %c0_i32 : i32, i32
  }
}

</mosaic_0001>

<llo_original>
// kernel: tpu_custom_call.1
$region0: #{tpu_custom_call.1}
  #allocation0 [shape = 'u32[]', space=smem, size = 0x4, offset = 0x4, fixed_abs, tag = 'smem constant byte address 0x4 - core index']
  #allocation1 [shape = 'u32[144,128]{1,0:T(1,128)}', space=vmem, size = 0x12000, scoped, tag = 'internal scratch']
  %s0 = inlined_call_operand.vmem [shape: bf16[16,32], index: 0, kind: input, shape index: {}]
  %s1 = inlined_call_operand.vmem [shape: bf16[32,256], index: 1, kind: input, shape index: {}]
  %s2 = inlined_call_operand.vmem [shape: f32[1,256], index: 2, kind: input, shape index: {}]
  %s3 = inlined_call_operand.vmem [shape: bf16[256,32], index: 3, kind: input, shape index: {}]
  %s4 = inlined_call_operand.vmem [shape: f32[1,32], index: 4, kind: input, shape index: {}]
  %s5 = inlined_call_operand.hbm [shape: f32[16,32], index: 5, kind: output, shape index: {}]
  %s6 = sld [smem:[#allocation0]]
  $region30: #{tpu_custom_call.1} parent=0
    _
  %s8 = ssub.s32 1, %s6
  %s9 = scalar_select 0, %s8, %s6
  $region1: #{tpu_custom_call.1} parent=0
    #allocation2 [shape = 'u8[8192]{0}', space=vmem, size = 0x2000, scoped, tag = 'output window, operand 0, single buffered']
    #allocation3 [shape = 's32[1]{0}', space=sflag, size = 0x4, scoped, tag = 'scoped memory for tpu_custom_call.1']
    %10 = vsyncpa [#allocation3], 0
    // Predicated region
    $region2: #{tpu_custom_call.1} parent=1 // pred_check
      _
    $region3: #{tpu_custom_call.1} parent=1 // pred_check_branch
      %12 = sbr.rel (0) target = $region5
    $region4: #{tpu_custom_call.1} parent=1 // pred_region
      _
    $region5: #{tpu_custom_call.1} parent=1 // pred_fallthru
      _
    // Predicated region
    $region6: #{tpu_custom_call.1} parent=1 // pred_check
      _
    $region7: #{tpu_custom_call.1} parent=1 // pred_check_branch
      %14 = sbr.rel (0) target = $region9
    $region8: #{tpu_custom_call.1} parent=1 // pred_region
      _
    $region9: #{tpu_custom_call.1} parent=1 // pred_fallthru
      _
    // Predicated region
    $region10: #{tpu_custom_call.1} parent=1 // pred_check
      _
    $region11: #{tpu_custom_call.1} parent=1 // pred_check_branch
      %16 = sbr.rel (0) target = $region13
    $region12: #{tpu_custom_call.1} parent=1 // pred_region
      _
    $region13: #{tpu_custom_call.1} parent=1 // pred_fallthru
      _
    // Predicated region
    $region14: #{tpu_custom_call.1} parent=1 // pred_check
      _
    $region15: #{tpu_custom_call.1} parent=1 // pred_check_branch
      %18 = sbr.rel (0) target = $region17
    $region16: #{tpu_custom_call.1} parent=1 // pred_region
      _
    $region17: #{tpu_custom_call.1} parent=1 // pred_fallthru
      _
    // Predicated region
    $region18: #{tpu_custom_call.1} parent=1 // pred_check
      _
    $region19: #{tpu_custom_call.1} parent=1 // pred_check_branch
      %20 = sbr.rel (0) target = $region21
    $region20: #{tpu_custom_call.1} parent=1 // pred_region
      _
    $region21: #{tpu_custom_call.1} parent=1 // pred_fallthru
      _
    %v22 = vld [vmem:[%s0] sm:$0xf]
    %v23 = vld [vmem:[%s0 + $0x4] sm:$0xf]
    %v24 = vld [vmem:[%s1] sm:$0xff]
    %v25 = vld [vmem:[%s1 + $0x8] sm:$0xff]
    %v26 = vld [vmem:[%s1 + $0x10] sm:$0xff]
    %v27 = vld [vmem:[%s1 + $0x18] sm:$0xff]
    %v28 = vld [vmem:[%s2] sm:$0x3]
    %v30 = vlaneseq
    %v31 = vshrl.u32 %v30, 7
    %v32 = vsub.s32 0, %v31
    %v33 = vrot.slane %v28, %v32
    %v34 = vlaneseq
    %v35 = vshrl.u32 %v34, 7
    %v36 = vsub.s32 1, %v35
    %v37 = vrot.slane %v28, %v36
    %v42 = vunpack.c.l.b16 %v22
    %v43 = vunpack.c.l.b16 %v23
    %v44 = vpack.c.b16 %v43, %v42
    %v49 = vunpack.c.l.b16 %v24
    %v50 = vunpack.c.h.b16 %v24
    %v51 = vunpack.c.l.b16 %v25
    %v52 = vunpack.c.h.b16 %v25
    %v53 = vunpack.c.l.b16 %v26
    %v54 = vunpack.c.h.b16 %v26
    %v55 = vunpack.c.l.b16 %v27
    %v56 = vunpack.c.h.b16 %v27
    %v57 = vpack.c.b16 %v51, %v49
    %v58 = vpack.c.b16 %v52, %v50
    %v59 = vpack.c.b16 %v55, %v53
    %v60 = vpack.c.b16 %v56, %v54
    %vm65 = vcmask 261120
    %v67 = vsel %vm65, %v44, 0
    %69 = vmatprep.subr.bf16.mxu0 %v58
    %70 = vmatpush1.bf16.msra.mxu0 %v57
    %71 = vmatprep.subr.bf16.mxu0 %v60
    %72 = vmatpush1.bf16.msra.mxu0 %v59
    %73 = vmatprep.subr.bf16.mxu0 0
    %74 = vmatpush1.bf16.msra.mxu0 0
    %75 = vmatprep.subr.bf16.mxu0 0
    %76 = vmatpush1.bf16.msra.mxu0 0
    %77 = vmatprep.subr.bf16.mxu0 0
    %78 = vmatpush1.bf16.msra.mxu0 0
    %79 = vmatprep.subr.bf16.mxu0 0
    %80 = vmatpush1.bf16.msra.mxu0 0
    %81 = vmatprep.subr.bf16.mxu0 0
    %82 = vmatpush1.bf16.msra.mxu0 0
    %83 = vmatprep.subr.bf16.mxu0 0
    %84 = vmatpush1.bf16.msra.mxu0 0
    %85 = vmatprep.subr.bf16.mxu0 0
    %86 = vmatpush1.bf16.msra.mxu0 0
    %87 = vmatprep.subr.bf16.mxu0 0
    %88 = vmatpush1.bf16.msra.mxu0 0
    %89 = vmatprep.subr.bf16.mxu0 0
    %90 = vmatpush1.bf16.msra.mxu0 0
    %91 = vmatprep.subr.bf16.mxu0 0
    %92 = vmatpush1.bf16.msra.mxu0 0
    %93 = vmatprep.subr.bf16.mxu0 0
    %94 = vmatpush1.bf16.msra.mxu0 0
    %95 = vmatprep.subr.bf16.mxu0 0
    %96 = vmatpush1.bf16.msra.mxu0 0
    %97 = vmatprep.subr.bf16.mxu0 0
    %98 = vmatpush1.bf16.msra.mxu0 0
    %99 = vmatprep.subr.bf16.mxu0 0
    %100 = vmatpush1.bf16.msra.mxu0 0
    %101 = vmatprep.mubr.bf16.mxu0 0
    %102 = vmatmul.mubr.bf16.gmra.mrb[0].mxu0 %v67
    %v103 = vpop.f32.mrb[0].mxu0
    %v104 = vadd.f32 %v33, %v103
    %v105 = vpop.f32.mrb[0].mxu0
    %v106 = vadd.f32 %v37, %v105
    %v107 = vpop.f32.mrb[0].mxu0
    %v108 = vadd.f32 %v33, %v107
    %v109 = vpop.f32.mrb[0].mxu0
    %v110 = vadd.f32 %v37, %v109
    %111 = vdwg.mxu0
    %v112 = vmax.f32 %v104, 0.0
    %v113 = vmax.f32 %v106, 0.0
    %v114 = vmax.f32 %v108, 0.0
    %v115 = vmax.f32 %v110, 0.0
    %v116 = vpack.c.bf16 %v114, %v112
    %v117 = vpack.c.bf16 %v115, %v113
    %v118 = vld [vmem:[%s3] sm:$0xf]
    %v119 = vld [vmem:[%s3 + $0x4] sm:$0xf]
    %v120 = vld [vmem:[%s3 + $0x8] sm:$0xf]
    %v121 = vld [vmem:[%s3 + $0xc] sm:$0xf]
    %v122 = vld [vmem:[%s3 + $0x10] sm:$0xf]
    %v123 = vld [vmem:[%s3 + $0x14] sm:$0xf]
    %v124 = vld [vmem:[%s3 + $0x18] sm:$0xf]
    %v125 = vld [vmem:[%s3 + $0x1c] sm:$0xf]
    %v126 = vld [vmem:[%s3 + $0x20] sm:$0xf]
    %v127 = vld [vmem:[%s3 + $0x24] sm:$0xf]
    %v128 = vld [vmem:[%s3 + $0x28] sm:$0xf]
    %v129 = vld [vmem:[%s3 + $0x2c] sm:$0xf]
    %v130 = vld [vmem:[%s3 + $0x30] sm:$0xf]
    %v131 = vld [vmem:[%s3 + $0x34] sm:$0xf]
    %v132 = vld [vmem:[%s3 + $0x38] sm:$0xf]
    %v133 = vld [vmem:[%s3 + $0x3c] sm:$0xf]
    %v134 = vld [vmem:[%s3 + $0x40] sm:$0xf]
    %v135 = vld [vmem:[%s3 + $0x44] sm:$0xf]
    %v136 = vld [vmem:[%s3 + $0x48] sm:$0xf]
    %v137 = vld [vmem:[%s3 + $0x4c] sm:$0xf]
    %v138 = vld [vmem:[%s3 + $0x50] sm:$0xf]
    %v139 = vld [vmem:[%s3 + $0x54] sm:$0xf]
    %v140 = vld [vmem:[%s3 + $0x58] sm:$0xf]
    %v141 = vld [vmem:[%s3 + $0x5c] sm:$0xf]
    %v142 = vld [vmem:[%s3 + $0x60] sm:$0xf]
    %v143 = vld [vmem:[%s3 + $0x64] sm:$0xf]
    %v144 = vld [vmem:[%s3 + $0x68] sm:$0xf]
    %v145 = vld [vmem:[%s3 + $0x6c] sm:$0xf]
    %v146 = vld [vmem:[%s3 + $0x70] sm:$0xf]
    %v147 = vld [vmem:[%s3 + $0x74] sm:$0xf]
    %v148 = vld [vmem:[%s3 + $0x78] sm:$0xf]
    %v149 = vld [vmem:[%s3 + $0x7c] sm:$0xf]
    %v150 = vld [vmem:[%s4] sm:$0x1]
    %v152 = vlaneseq
    %v153 = vshrl.u32 %v152, 7
    %v154 = vsub.s32 0, %v153
    %v155 = vrot.slane %v150, %v154
    %v189 = vunpack.c.l.b16 %v118
    %v190 = vunpack.c.l.b16 %v119
    %v191 = vunpack.c.l.b16 %v120
    %v192 = vunpack.c.l.b16 %v121
    %v193 = vunpack.c.l.b16 %v122
    %v194 = vunpack.c.l.b16 %v123
    %v195 = vunpack.c.l.b16 %v124
    %v196 = vunpack.c.l.b16 %v125
    %v197 = vunpack.c.l.b16 %v126
    %v198 = vunpack.c.l.b16 %v127
    %v199 = vunpack.c.l.b16 %v128
    %v200 = vunpack.c.l.b16 %v129
    %v201 = vunpack.c.l.b16 %v130
    %v202 = vunpack.c.l.b16 %v131
    %v203 = vunpack.c.l.b16 %v132
    %v204 = vunpack.c.l.b16 %v133
    %v205 = vunpack.c.l.b16 %v134
    %v206 = vunpack.c.l.b16 %v135
    %v207 = vunpack.c.l.b16 %v136
    %v208 = vunpack.c.l.b16 %v137
    %v209 = vunpack.c.l.b16 %v138
    %v210 = vunpack.c.l.b16 %v139
    %v211 = vunpack.c.l.b16 %v140
    %v212 = vunpack.c.l.b16 %v141
    %v213 = vunpack.c.l.b16 %v142
    %v214 = vunpack.c.l.b16 %v143
    %v215 = vunpack.c.l.b16 %v144
    %v216 = vunpack.c.l.b16 %v145
    %v217 = vunpack.c.l.b16 %v146
    %v218 = vunpack.c.l.b16 %v147
    %v219 = vunpack.c.l.b16 %v148
    %v220 = vunpack.c.l.b16 %v149
    %v221 = vpack.c.b16 %v190, %v189
    %v222 = vpack.c.b16 %v192, %v191
    %v223 = vpack.c.b16 %v194, %v193
    %v224 = vpack.c.b16 %v196, %v195
    %v225 = vpack.c.b16 %v198, %v197
    %v226 = vpack.c.b16 %v200, %v199
    %v227 = vpack.c.b16 %v202, %v201
    %v228 = vpack.c.b16 %v204, %v203
    %v229 = vpack.c.b16 %v206, %v205
    %v230 = vpack.c.b16 %v208, %v207
    %v231 = vpack.c.b16 %v210, %v209
    %v232 = vpack.c.b16 %v212, %v211
    %v233 = vpack.c.b16 %v214, %v213
    %v234 = vpack.c.b16 %v216, %v215
    %v235 = vpack.c.b16 %v218, %v217
    %v236 = vpack.c.b16 %v220, %v219
    %253 = vmatprep.subr.bf16.mxu0 0
    %254 = vmatpush1.bf16.msra.mxu0 %v221
    %255 = vmatprep.subr.bf16.mxu0 0
    %256 = vmatpush1.bf16.msra.mxu0 %v222
    %257 = vmatprep.subr.bf16.mxu0 0
    %258 = vmatpush1.bf16.msra.mxu0 %v223
    %259 = vmatprep.subr.bf16.mxu0 0
    %260 = vmatpush1.bf16.msra.mxu0 %v224
    %261 = vmatprep.subr.bf16.mxu0 0
    %262 = vmatpush1.bf16.msra.mxu0 %v225
    %263 = vmatprep.subr.bf16.mxu0 0
    %264 = vmatpush1.bf16.msra.mxu0 %v226
    %265 = vmatprep.subr.bf16.mxu0 0
    %266 = vmatpush1.bf16.msra.mxu0 %v227
    %267 = vmatprep.subr.bf16.mxu0 0
    %268 = vmatpush1.bf16.msra.mxu0 %v228
    %269 = vmatprep.subr.bf16.mxu0 0
    %270 = vmatpush1.bf16.msra.mxu0 %v229
    %271 = vmatprep.subr.bf16.mxu0 0
    %272 = vmatpush1.bf16.msra.mxu0 %v230
    %273 = vmatprep.subr.bf16.mxu0 0
    %274 = vmatpush1.bf16.msra.mxu0 %v231
    %275 = vmatprep.subr.bf16.mxu0 0
    %276 = vmatpush1.bf16.msra.mxu0 %v232
    %277 = vmatprep.subr.bf16.mxu0 0
    %278 = vmatpush1.bf16.msra.mxu0 %v233
    %279 = vmatprep.subr.bf16.mxu0 0
    %280 = vmatpush1.bf16.msra.mxu0 %v234
    %281 = vmatprep.subr.bf16.mxu0 0
    %282 = vmatpush1.bf16.msra.mxu0 %v235
    %283 = vmatprep.subr.bf16.mxu0 0
    %284 = vmatpush1.bf16.msra.mxu0 %v236
    %285 = vmatprep.mubr.bf16.mxu0 %v117
    %286 = vmatmul.mubr.bf16.gmra.mrb[0].mxu0 %v116
    %v287 = vpop.f32.mrb[0].mxu0
    %v288 = vadd.f32 %v155, %v287
    %v289 = vpop.f32.mrb[0].mxu0
    %v290 = vpop.f32.mrb[0].mxu0
    %v291 = vadd.f32 %v155, %v290
    %v292 = vpop.f32.mrb[0].mxu0
    %293 = vdwg.mxu0
    %294 = vst.msk [vmem:[#allocation2] sm:$0xff] %vm65, %v288
    %295 = vst.msk [vmem:[#allocation2 + $0x8] sm:$0xff] %vm65, %v291
    // Predicated region
    $region22: #{tpu_custom_call.1} parent=1 // pred_check
      _
    $region23: #{tpu_custom_call.1} parent=1 // pred_check_branch
      %297 = sbr.rel (0) target = $region25
    $region24: #{tpu_custom_call.1} parent=1 // pred_region
      %s299 = ssub.s32 256, 256
      %300 = vsyncadd [#allocation3], %s299
      %s301 = sshll.u32 [#allocation2], 4
      %s302 = int_to_ptr.vmem [resolvable:$true] %s301
      %307 = dma.vmem_to_hbm [thread:$0]  %s302, 256, %s5, [#allocation3], 128, 128, 8
    $region25: #{tpu_custom_call.1} parent=1 // pred_fallthru
      _
    // Predicated region
    $region26: #{tpu_custom_call.1} parent=1 // pred_check
      _
    $region27: #{tpu_custom_call.1} parent=1 // pred_check_branch
      %309 = sbr.rel (0) target = $region29
    $region28: #{tpu_custom_call.1} parent=1 // pred_region
      %310 = dma.done [#allocation3], 256
    $region29: #{tpu_custom_call.1} parent=1 // pred_fallthru
      _
    %311 = vsyncpa [#allocation3], 1

</llo_original>
